<compile_context>
chip_gen: v7x
topology: tpu7x:2x2x1
jax: 0.10.0
libtpu: 0.0.40
codegen_flags: <defaults>
</compile_context>

<pallas_src>
import numpy as np
import jax
import jax.numpy as jnp
from jax.experimental import pallas as pl
from jax.experimental.pallas import tpu as pltpu


def fused_bidir_gru_kernel(tok_ref, emb_row_ref, h_ref, w_ref, b_ref, out_ref):
    # tok_ref (SMEM scalar prefetch) is consumed by the embedding BlockSpec index_map.
    del tok_ref
    H2 = h_ref.shape[1]                      # 2H (packed [fwd | bwd])

    x = emb_row_ref[0]                       # (1, H)   gathered embedding row, f32
    h = h_ref[...]                           # (1, 2H)  packed [h_fwd | h_bwd], f32

    # Single fused matmul over LHS [x | h_fwd | h_bwd]; operands in the weight dtype
    # (bf16 fast path -> native MXU), accumulation forced to f32.
    lhs = jnp.concatenate([x, h], axis=1).astype(w_ref.dtype)            # (1, 3H)
    g = jnp.dot(lhs, w_ref[...], preferred_element_type=jnp.float32)     # (1, 8H) f32
    g = g + b_ref[...]                                                    # f32 bias add

    # Every slice below is a whole number of 128-lane vregs (H = 64 -> 128-wide pairs).
    r = jax.nn.sigmoid(g[:, 0:H2])                        # [r_fwd   | r_bwd]
    z = jax.nn.sigmoid(g[:, H2:2 * H2])                   # [z_fwd   | z_bwd]
    n = jnp.tanh(g[:, 2 * H2:3 * H2] + r * g[:, 3 * H2:4 * H2])   # gi_n + r * gh_n
    out_ref[...] = ((1.0 - z) * n + z * h).astype(out_ref.dtype)  # [h_fwd' | h_bwd']


def init_params(key, input_size, hidden_size):
    """Synthetic parameters matching nn.Embedding(V,H) + nn.GRU(H,H,1,bias=True,
    batch_first=True, dropout=0, bidirectional=True), in raw PyTorch layout."""
    V, H = input_size, hidden_size
    ks = jax.random.split(key, 9)

    def u(k, shape, fan_in):
        bound = 1.0 / np.sqrt(fan_in)
        return jax.random.uniform(k, shape, jnp.float32, -bound, bound)

    return dict(
        embedding=jax.random.normal(ks[0], (V, H), jnp.float32) * 0.1,
        # index 0 = forward direction, index 1 = reverse direction; gate order (r, z, n)
        W_ih=jnp.stack([u(ks[1], (3 * H, H), H), u(ks[2], (3 * H, H), H)]),   # (2, 3H, H)
        W_hh=jnp.stack([u(ks[3], (3 * H, H), H), u(ks[4], (3 * H, H), H)]),   # (2, 3H, H)
        b_ih=jnp.stack([u(ks[5], (3 * H,), H), u(ks[6], (3 * H,), H)]),       # (2, 3H)
        b_hh=jnp.stack([u(ks[7], (3 * H,), H), u(ks[8], (3 * H,), H)]),       # (2, 3H)
    )


def prepare_params(params, weight_dtype=jnp.bfloat16):
    """One-time layout prep (hoisted out of the per-step forward).

    Builds the block-structured fused RHS of shape (3H, 8H) over LHS [x | h_fwd | h_bwd]:
      column blocks (each H wide):
        [r_fwd | r_bwd | z_fwd | z_bwd | gi_n_fwd | gi_n_bwd | gh_n_fwd | gh_n_bwd]
    and the matching (1, 8H) bias row with b_ih + b_hh pre-summed for the r/z columns.
    The embedding table is reshaped to (V, 1, H) so one row can be gathered by BlockSpec.
    """
    H = params["W_ih"].shape[-1]
    W_ih, W_hh = params["W_ih"], params["W_hh"]       # (2, 3H, H), gate order (r, z, n)
    b_ih, b_hh = params["b_ih"], params["b_hh"]       # (2, 3H)
    Z = jnp.zeros((H, H), jnp.float32)

    def ih(d, g):   # (H, H) pre-transposed input-hidden weight, direction d, gate g
        return W_ih[d, g * H:(g + 1) * H, :].T

    def hh(d, g):   # (H, H) pre-transposed hidden-hidden weight
        return W_hh[d, g * H:(g + 1) * H, :].T

    # rows 0:H   -> multiplied by x
    row_x  = jnp.concatenate([ih(0, 0), ih(1, 0), ih(0, 1), ih(1, 1),
                              ih(0, 2), ih(1, 2), Z,        Z       ], axis=1)
    # rows H:2H  -> multiplied by h_fwd
    row_hf = jnp.concatenate([hh(0, 0), Z,        hh(0, 1), Z,
                              Z,        Z,        hh(0, 2), Z       ], axis=1)
    # rows 2H:3H -> multiplied by h_bwd
    row_hb = jnp.concatenate([Z,        hh(1, 0), Z,        hh(1, 1),
                              Z,        Z,        Z,        hh(1, 2)], axis=1)
    w_fused = jnp.concatenate([row_x, row_hf, row_hb], axis=0).astype(weight_dtype)  # (3H, 8H)

    b_fused = jnp.concatenate([
        b_ih[0, 0:H] + b_hh[0, 0:H],           # r_fwd
        b_ih[1, 0:H] + b_hh[1, 0:H],           # r_bwd
        b_ih[0, H:2 * H] + b_hh[0, H:2 * H],   # z_fwd
        b_ih[1, H:2 * H] + b_hh[1, H:2 * H],   # z_bwd
        b_ih[0, 2 * H:3 * H],                  # gi_n_fwd
        b_ih[1, 2 * H:3 * H],                  # gi_n_bwd
        b_hh[0, 2 * H:3 * H],                  # gh_n_fwd
        b_hh[1, 2 * H:3 * H],                  # gh_n_bwd
    ]).reshape(1, 8 * H).astype(jnp.float32)

    return dict(
        embedding=params["embedding"].reshape(-1, 1, H),   # (V, 1, H) for row gather
        w_fused=w_fused,                                   # (3H, 8H)
        b_fused=b_fused,                                   # (1, 8H)
    )


def bidirectional_encoder_forward(prepped, token, hidden):
    """Pallas-backed forward (single launch).  token: int id; hidden: (2, 1, H).
    Returns (output (1,1,2H), hidden (2,1,H)) like the PyTorch module."""
    w = prepped["w_fused"]
    H = w.shape[0] // 3
    tok = jnp.asarray(token, jnp.int32).reshape((1,))
    h_packed = hidden.reshape(1, 2 * H)        # contiguous -> [h_fwd | h_bwd]

    grid_spec = pltpu.PrefetchScalarGridSpec(
        num_scalar_prefetch=1,
        grid=(1,),
        in_specs=[
            # token-indexed (1, H) row gather from the (V, 1, H) embedding table
            pl.BlockSpec((1, 1, H), lambda i, tok_ref: (tok_ref[0], 0, 0)),
            pl.BlockSpec((1, 2 * H), lambda i, tok_ref: (0, 0)),          # packed hidden
            pl.BlockSpec((3 * H, 8 * H), lambda i, tok_ref: (0, 0)),      # fused weights
            pl.BlockSpec((1, 8 * H), lambda i, tok_ref: (0, 0)),          # fused bias
        ],
        out_specs=pl.BlockSpec((1, 2 * H), lambda i, tok_ref: (0, 0)),
    )

    out = pl.pallas_call(
        fused_bidir_gru_kernel,
        out_shape=jax.ShapeDtypeStruct((1, 2 * H), jnp.float32),   # packed [h_fwd'|h_bwd']
        grid_spec=grid_spec,
        compiler_params=pltpu.CompilerParams(dimension_semantics=("arbitrary",)),
    )(tok, prepped["embedding"], h_packed, w, prepped["b_fused"])

    output = out.reshape(1, 1, 2 * H)          # (batch=1, seq=1, 2H)
    hidden_new = out.reshape(2, 1, H)          # (num_directions, batch=1, H)
    return output, hidden_new


def reference_forward(params, token, hidden):
    """Pure-JAX f32 reference mirroring the PyTorch bidirectional GRU (seq_len = 1)."""
    H = params["W_ih"].shape[-1]
    emb = params["embedding"][jnp.asarray(token).reshape(())].reshape(1, H)
    h_out = []
    for d in range(2):
        h_d = hidden[d]                                          # (1, H)
        gi = emb @ params["W_ih"][d].T + params["b_ih"][d]
        gh = h_d @ params["W_hh"][d].T + params["b_hh"][d]
        i_r, i_z, i_n = jnp.split(gi, 3, axis=1)
        h_r, h_z, h_n = jnp.split(gh, 3, axis=1)
        r = jax.nn.sigmoid(i_r + h_r)
        z = jax.nn.sigmoid(i_z + h_z)
        n = jnp.tanh(i_n + r * h_n)
        h_out.append((1.0 - z) * n + z * h_d)
    output = jnp.concatenate(h_out, axis=1).reshape(1, 1, 2 * H)
    hidden_new = jnp.concatenate(h_out, axis=0).reshape(2, 1, H)
    return output, hidden_new


if __name__ == "__main__":
    input_size, hidden_size = 16, 64   # H=64 -> each [fwd|bwd] gate pair is exactly 128 lanes

    key = jax.random.PRNGKey(0)
    kp, kh = jax.random.split(key)
    params = init_params(kp, input_size, hidden_size)

    token = jnp.array(3, dtype=jnp.int32)                                    # encoder input id
    hidden = jax.random.normal(kh, (2, 1, hidden_size), jnp.float32) * 0.5   # (num_dirs, 1, H)

    fwd = jax.jit(bidirectional_encoder_forward)
    r_out, r_hid = reference_forward(params, token, hidden)

    # 1) strict check: f32 fused weights must reproduce the PyTorch-layout reference
    prepped_f32 = prepare_params(params, weight_dtype=jnp.float32)
    out32, hid32 = fwd(prepped_f32, token, hidden)
    jax.block_until_ready((out32, hid32))
    np.testing.assert_allclose(np.asarray(out32), np.asarray(r_out), rtol=2e-5, atol=2e-5)
    np.testing.assert_allclose(np.asarray(hid32), np.asarray(r_hid), rtol=2e-5, atol=2e-5)

    # 2) fast path: bf16 fused weights on the MXU, f32 gate math (bf16-level tolerance)
    prepped_bf16 = prepare_params(params, weight_dtype=jnp.bfloat16)
    out16, hid16 = fwd(prepped_bf16, token, hidden)
    jax.block_until_ready((out16, hid16))
    np.testing.assert_allclose(np.asarray(out16), np.asarray(r_out), rtol=2e-2, atol=2e-2)
    np.testing.assert_allclose(np.asarray(hid16), np.asarray(r_hid), rtol=2e-2, atol=2e-2)

    print("KERNEL_OK")
</pallas_src>

<mosaic_0001>
module attributes {stable_mosaic.version = 11 : i64} {
  func.func @fused_bidir_gru_kernel(%arg0: i32, %arg1: memref<1xi32, #tpu.memory_space<smem>>, %arg2: memref<1x1x64xf32, #tpu.memory_space<vmem>>, %arg3: memref<1x128xf32, #tpu.memory_space<vmem>>, %arg4: memref<192x512xf32, #tpu.memory_space<vmem>>, %arg5: memref<1x512xf32, #tpu.memory_space<vmem>>, %arg6: memref<1x128xf32, #tpu.memory_space<vmem>>) attributes {dimension_semantics = [#tpu.dimension_semantics<arbitrary>], iteration_bounds = array<i64: 1>, scalar_prefetch = 1 : i64, scratch_operands = 0 : i64, tpu.core_type = #tpu.core_type<tc>, window_params = [{transform_indices = @transform_0, window_bounds = array<i64: 1, 1, 64>}, {pipeline_mode = #tpu.pipeline_mode<synchronous>, transform_indices = @transform_1, window_bounds = array<i64: 1, 128>}, {pipeline_mode = #tpu.pipeline_mode<synchronous>, transform_indices = @transform_2, window_bounds = array<i64: 192, 512>}, {pipeline_mode = #tpu.pipeline_mode<synchronous>, transform_indices = @transform_3, window_bounds = array<i64: 1, 512>}, {pipeline_mode = #tpu.pipeline_mode<synchronous>, transform_indices = @transform_4, window_bounds = array<i64: 1, 128>}]} {
    %c0 = arith.constant 0 : index
    %c0_0 = arith.constant 0 : index
    %c0_1 = arith.constant 0 : index
    %0 = vector.load %arg2[%c0, %c0_0, %c0_1] : memref<1x1x64xf32, #tpu.memory_space<vmem>>, vector<1x1x64xf32>
    %1 = vector.shape_cast %0 : vector<1x1x64xf32> to vector<1x64xf32>
    %c0_2 = arith.constant 0 : index
    %c0_3 = arith.constant 0 : index
    %2 = vector.load %arg3[%c0_2, %c0_3] : memref<1x128xf32, #tpu.memory_space<vmem>>, vector<1x128xf32>
    %3 = tpu.concatenate %1, %2 in 1 : vector<1x64xf32>, vector<1x128xf32> -> vector<1x192xf32>
    %c0_4 = arith.constant 0 : index
    %c0_5 = arith.constant 0 : index
    %4 = vector.load %arg4[%c0_4, %c0_5] : memref<192x512xf32, #tpu.memory_space<vmem>>, vector<192x512xf32>
    %cst = arith.constant dense<0.000000e+00> : vector<1x512xf32>
    %5 = tpu.matmul %3, %4, %cst {dimension_numbers = #tpu.dot_dimension_numbers<[1], [0], [0], [1], [0, 0, 1, 1], [], []>} : vector<1x192xf32>, vector<192x512xf32>, vector<1x512xf32> -> vector<1x512xf32>
    %c0_6 = arith.constant 0 : index
    %c0_7 = arith.constant 0 : index
    %6 = vector.load %arg5[%c0_6, %c0_7] : memref<1x512xf32, #tpu.memory_space<vmem>>, vector<1x512xf32>
    %7 = arith.addf %5, %6 : vector<1x512xf32>
    %8 = vector.extract_strided_slice %7 {offsets = [0, 0], sizes = [1, 128], strides = [1, 1]} : vector<1x512xf32> to vector<1x128xf32>
    %9 = arith.negf %8 : vector<1x128xf32>
    %10 = math.exp %9 : vector<1x128xf32>
    %cst_8 = arith.constant 1.000000e+00 : f32
    %11 = vector.broadcast %cst_8 : f32 to vector<1x128xf32>
    %12 = arith.addf %11, %10 : vector<1x128xf32>
    %13 = arith.divf %11, %12 : vector<1x128xf32>
    %14 = vector.extract_strided_slice %7 {offsets = [0, 128], sizes = [1, 128], strides = [1, 1]} : vector<1x512xf32> to vector<1x128xf32>
    %15 = arith.negf %14 : vector<1x128xf32>
    %16 = math.exp %15 : vector<1x128xf32>
    %cst_9 = arith.constant 1.000000e+00 : f32
    %17 = vector.broadcast %cst_9 : f32 to vector<1x128xf32>
    %18 = arith.addf %17, %16 : vector<1x128xf32>
    %19 = arith.divf %17, %18 : vector<1x128xf32>
    %20 = vector.extract_strided_slice %7 {offsets = [0, 256], sizes = [1, 128], strides = [1, 1]} : vector<1x512xf32> to vector<1x128xf32>
    %21 = vector.extract_strided_slice %7 {offsets = [0, 384], sizes = [1, 128], strides = [1, 1]} : vector<1x512xf32> to vector<1x128xf32>
    %22 = arith.mulf %13, %21 : vector<1x128xf32>
    %23 = arith.addf %20, %22 : vector<1x128xf32>
    %24 = math.tanh %23 : vector<1x128xf32>
    %cst_10 = arith.constant 1.000000e+00 : f32
    %25 = vector.broadcast %cst_10 : f32 to vector<1x128xf32>
    %26 = arith.subf %25, %19 : vector<1x128xf32>
    %27 = arith.mulf %26, %24 : vector<1x128xf32>
    %28 = arith.mulf %19, %2 : vector<1x128xf32>
    %29 = arith.addf %27, %28 : vector<1x128xf32>
    %c0_11 = arith.constant 0 : index
    %c0_12 = arith.constant 0 : index
    %30 = vector.load %arg6[%c0_11, %c0_12] : memref<1x128xf32, #tpu.memory_space<vmem>>, vector<1x128xf32>
    tpu.vector_store %arg6[%c0_11, %c0_12], %29 {strides = array<i32>} : memref<1x128xf32, #tpu.memory_space<vmem>>, vector<1x128xf32>,
    return
  }
  func.func @transform_0(%arg0: i32, %arg1: memref<1xi32, #tpu.memory_space<smem>>) -> (i32, i32, i32) {
    %c0 = arith.constant 0 : index
    %0 = memref.load %arg1[%c0] : memref<1xi32, #tpu.memory_space<smem>>
    %c0_i32 = arith.constant 0 : i32
    %c0_i32_0 = arith.constant 0 : i32
    %c0_i32_1 = arith.constant 0 : i32
    return %0, %c0_i32, %c0_i32_0 : i32, i32, i32
  }
  func.func @transform_1(%arg0: i32, %arg1: memref<1xi32, #tpu.memory_space<smem>>) -> (i32, i32) {
    %c0_i32 = arith.constant 0 : i32
    %c0_i32_0 = arith.constant 0 : i32
    %c0_i32_1 = arith.constant 0 : i32
    return %c0_i32, %c0_i32_0 : i32, i32
  }
  func.func @transform_2(%arg0: i32, %arg1: memref<1xi32, #tpu.memory_space<smem>>) -> (i32, i32) {
    %c0_i32 = arith.constant 0 : i32
    %c0_i32_0 = arith.constant 0 : i32
    %c0_i32_1 = arith.constant 0 : i32
    return %c0_i32, %c0_i32_0 : i32, i32
  }
  func.func @transform_3(%arg0: i32, %arg1: memref<1xi32, #tpu.memory_space<smem>>) -> (i32, i32) {
    %c0_i32 = arith.constant 0 : i32
    %c0_i32_0 = arith.constant 0 : i32
    %c0_i32_1 = arith.constant 0 : i32
    return %c0_i32, %c0_i32_0 : i32, i32
  }
  func.func @transform_4(%arg0: i32, %arg1: memref<1xi32, #tpu.memory_space<smem>>) -> (i32, i32) {
    %c0_i32 = arith.constant 0 : i32
    %c0_i32_0 = arith.constant 0 : i32
    %c0_i32_1 = arith.constant 0 : i32
    return %c0_i32, %c0_i32_0 : i32, i32
  }
}

</mosaic_0001>

<llo_original>
// kernel: bidirectional_encoder_forward.1
$region0: #{bidirectional_encoder_forward.1}
  #allocation0 [shape = 'u32[]', space=smem, size = 0x4, offset = 0x4, fixed_abs, tag = 'smem constant byte address 0x4 - core index']
  #allocation1 [shape = 'u32[144,128]{1,0:T(1,128)}', space=vmem, size = 0x12000, scoped, tag = 'internal scratch']
  #allocation2 [shape = 's32[1]{0}', space=sflag, size = 0x4, scoped, tag = 'scoped memory for bidirectional_encoder_forward.1']
  #allocation3 [shape = 's32[1]{0:T(128)S(6)}', space=smem, size = 0x200, scoped, tag = 'prefetched SMEM operand 0']
  %s0 = inlined_call_operand.<no memory space> [shape: s32[1], index: 0, kind: input, shape index: {}]
  %s1 = inlined_call_operand.vmem [shape: f32[16,1,64], index: 1, kind: input, shape index: {}]
  %s2 = inlined_call_operand.vmem [shape: f32[1,128], index: 2, kind: input, shape index: {}]
  %s3 = inlined_call_operand.hbm [shape: f32[192,512], index: 3, kind: input, shape index: {}]
  %s4 = inlined_call_operand.vmem [shape: f32[1,512], index: 4, kind: input, shape index: {}]
  %s5 = inlined_call_operand.vmem [shape: f32[1,128], index: 5, kind: output, shape index: {}]
  %s6 = sld [smem:[#allocation0]]
  $region30: #{bidirectional_encoder_forward.1} parent=0
    _
  %s8 = ssub.s32 1, %s6
  %s9 = scalar_select 0, %s8, %s6
  %10 = sst [smem:[#allocation3]] %s0
  $region1: #{bidirectional_encoder_forward.1} parent=0
    #allocation4 [shape = 'u8[393216]{0}', space=vmem, size = 0x60000, scoped, tag = 'input window, operand 3, single buffered']
    #allocation5 [shape = 's32[1]{0}', space=sflag, size = 0x4, scoped, tag = 'scoped memory for bidirectional_encoder_forward.1']
    %11 = vsyncpa [#allocation5], 0
    // Predicated region
    $region2: #{bidirectional_encoder_forward.1} parent=1 // pred_check
      _
    $region3: #{bidirectional_encoder_forward.1} parent=1 // pred_check_branch
      %13 = sbr.rel (0) target = $region5
    $region4: #{bidirectional_encoder_forward.1} parent=1 // pred_region
      %s14 = sld [smem:[#allocation3]]
      %p15 = scmp.lt.s32.totalorder %s14, 15
      %s16 = scalar_select %p15, %s14, 15
      %s17 = scalar_lea.vmem %s1, %s16
      %s18 = sld [smem:[#allocation3]]
    $region5: #{bidirectional_encoder_forward.1} parent=1 // pred_fallthru
      _
    // Predicated region
    $region6: #{bidirectional_encoder_forward.1} parent=1 // pred_check
      _
    $region7: #{bidirectional_encoder_forward.1} parent=1 // pred_check_branch
      %20 = sbr.rel (0) target = $region9
    $region8: #{bidirectional_encoder_forward.1} parent=1 // pred_region
      _
    $region9: #{bidirectional_encoder_forward.1} parent=1 // pred_fallthru
      _
    // Predicated region
    $region10: #{bidirectional_encoder_forward.1} parent=1 // pred_check
      _
    $region11: #{bidirectional_encoder_forward.1} parent=1 // pred_check_branch
      %22 = sbr.rel (0) target = $region13
    $region12: #{bidirectional_encoder_forward.1} parent=1 // pred_region
      %s24 = ssub.s32 12288, 12288
      %25 = vsyncadd [#allocation5], %s24
      %s26 = sshll.u32 [#allocation4], 4
      %s27 = int_to_ptr.vmem [resolvable:$true] %s26
      %32 = dma.hbm_to_vmem [thread:$0]  %s3, 12288, %s27, [#allocation5], 512, 512, 32
    $region13: #{bidirectional_encoder_forward.1} parent=1 // pred_fallthru
      _
    // Predicated region
    $region14: #{bidirectional_encoder_forward.1} parent=1 // pred_check
      _
    $region15: #{bidirectional_encoder_forward.1} parent=1 // pred_check_branch
      %34 = sbr.rel (0) target = $region17
    $region16: #{bidirectional_encoder_forward.1} parent=1 // pred_region
      _
    $region17: #{bidirectional_encoder_forward.1} parent=1 // pred_fallthru
      _
    // Predicated region
    $region18: #{bidirectional_encoder_forward.1} parent=1 // pred_check
      _
    $region19: #{bidirectional_encoder_forward.1} parent=1 // pred_check_branch
      %36 = sbr.rel (0) target = $region21
    $region20: #{bidirectional_encoder_forward.1} parent=1 // pred_region
      %37 = dma.done [#allocation5], 12288
    $region21: #{bidirectional_encoder_forward.1} parent=1 // pred_fallthru
      _
    %s38 = sld [smem:[#allocation3]]
    %p39 = scmp.lt.s32.totalorder %s38, 15
    %s40 = scalar_select %p39, %s38, 15
    %s41 = scalar_lea.vmem %s1, %s40
    %s42 = sld [smem:[#allocation3]]
    %p43 = scmp.lt.s32.totalorder %s42, 15
    %s44 = scalar_select %p43, %s42, 15
    %s45 = scalar_lea.vmem %s1, %s44
    %s46 = sld [smem:[#allocation3]]
    %v47 = vld [vmem:[%s45] sm:$0x1]
    %v48 = vld [vmem:[%s2] sm:$0x1]
    %v50 = vlaneseq
    %v51 = vshrl.u32 %v50, 7
    %v52 = vsub.s32 0, %v51
    %v53 = vrot.slane %v48, %v52
    %54 = vrot.lane.b32.xlu0 %v53, 64
    %v55 = vpop.permute.xlu0 %54
    %vm57 = vcmask 523264
    %v58 = vsel %vm57, %v47, %v55
    %v59 = vld [vmem:[#allocation4] sm:$0xff]
    %v60 = vld [vmem:[#allocation4 + $0x8] sm:$0xff]
    %v61 = vld [vmem:[#allocation4 + $0x10] sm:$0xff]
    %v62 = vld [vmem:[#allocation4 + $0x18] sm:$0xff]
    %v63 = vld [vmem:[#allocation4 + $0x20] sm:$0xff]
    %v64 = vld [vmem:[#allocation4 + $0x28] sm:$0xff]
    %v65 = vld [vmem:[#allocation4 + $0x30] sm:$0xff]
    %v66 = vld [vmem:[#allocation4 + $0x38] sm:$0xff]
    %v67 = vld [vmem:[#allocation4 + $0x40] sm:$0xff]
    %v68 = vld [vmem:[#allocation4 + $0x48] sm:$0xff]
    %v69 = vld [vmem:[#allocation4 + $0x50] sm:$0xff]
    %v70 = vld [vmem:[#allocation4 + $0x58] sm:$0xff]
    %v71 = vld [vmem:[#allocation4 + $0x60] sm:$0xff]
    %v72 = vld [vmem:[#allocation4 + $0x68] sm:$0xff]
    %v73 = vld [vmem:[#allocation4 + $0x70] sm:$0xff]
    %v74 = vld [vmem:[#allocation4 + $0x78] sm:$0xff]
    %v75 = vld [vmem:[#allocation4 + $0x80] sm:$0xff]
    %v76 = vld [vmem:[#allocation4 + $0x88] sm:$0xff]
    %v77 = vld [vmem:[#allocation4 + $0x90] sm:$0xff]
    %v78 = vld [vmem:[#allocation4 + $0x98] sm:$0xff]
    %v79 = vld [vmem:[#allocation4 + $0xa0] sm:$0xff]
    %v80 = vld [vmem:[#allocation4 + $0xa8] sm:$0xff]
    %v81 = vld [vmem:[#allocation4 + $0xb0] sm:$0xff]
    %v82 = vld [vmem:[#allocation4 + $0xb8] sm:$0xff]
    %v83 = vld [vmem:[#allocation4 + $0xc0] sm:$0xff]
    %v84 = vld [vmem:[#allocation4 + $0xc8] sm:$0xff]
    %v85 = vld [vmem:[#allocation4 + $0xd0] sm:$0xff]
    %v86 = vld [vmem:[#allocation4 + $0xd8] sm:$0xff]
    %v87 = vld [vmem:[#allocation4 + $0xe0] sm:$0xff]
    %v88 = vld [vmem:[#allocation4 + $0xe8] sm:$0xff]
    %v89 = vld [vmem:[#allocation4 + $0xf0] sm:$0xff]
    %v90 = vld [vmem:[#allocation4 + $0xf8] sm:$0xff]
    %v91 = vld [vmem:[#allocation4 + $0x100] sm:$0xff]
    %v92 = vld [vmem:[#allocation4 + $0x108] sm:$0xff]
    %v93 = vld [vmem:[#allocation4 + $0x110] sm:$0xff]
    %v94 = vld [vmem:[#allocation4 + $0x118] sm:$0xff]
    %v95 = vld [vmem:[#allocation4 + $0x120] sm:$0xff]
    %v96 = vld [vmem:[#allocation4 + $0x128] sm:$0xff]
    %v97 = vld [vmem:[#allocation4 + $0x130] sm:$0xff]
    %v98 = vld [vmem:[#allocation4 + $0x138] sm:$0xff]
    %v99 = vld [vmem:[#allocation4 + $0x140] sm:$0xff]
    %v100 = vld [vmem:[#allocation4 + $0x148] sm:$0xff]
    %v101 = vld [vmem:[#allocation4 + $0x150] sm:$0xff]
    %v102 = vld [vmem:[#allocation4 + $0x158] sm:$0xff]
    %v103 = vld [vmem:[#allocation4 + $0x160] sm:$0xff]
    %v104 = vld [vmem:[#allocation4 + $0x168] sm:$0xff]
    %v105 = vld [vmem:[#allocation4 + $0x170] sm:$0xff]
    %v106 = vld [vmem:[#allocation4 + $0x178] sm:$0xff]
    %v107 = vld [vmem:[#allocation4 + $0x180] sm:$0xff]
    %v108 = vld [vmem:[#allocation4 + $0x188] sm:$0xff]
    %v109 = vld [vmem:[#allocation4 + $0x190] sm:$0xff]
    %v110 = vld [vmem:[#allocation4 + $0x198] sm:$0xff]
    %v111 = vld [vmem:[#allocation4 + $0x1a0] sm:$0xff]
    %v112 = vld [vmem:[#allocation4 + $0x1a8] sm:$0xff]
    %v113 = vld [vmem:[#allocation4 + $0x1b0] sm:$0xff]
    %v114 = vld [vmem:[#allocation4 + $0x1b8] sm:$0xff]
    %v115 = vld [vmem:[#allocation4 + $0x1c0] sm:$0xff]
    %v116 = vld [vmem:[#allocation4 + $0x1c8] sm:$0xff]
    %v117 = vld [vmem:[#allocation4 + $0x1d0] sm:$0xff]
    %v118 = vld [vmem:[#allocation4 + $0x1d8] sm:$0xff]
    %v119 = vld [vmem:[#allocation4 + $0x1e0] sm:$0xff]
    %v120 = vld [vmem:[#allocation4 + $0x1e8] sm:$0xff]
    %v121 = vld [vmem:[#allocation4 + $0x1f0] sm:$0xff]
    %v122 = vld [vmem:[#allocation4 + $0x1f8] sm:$0xff]
    %v123 = vld [vmem:[#allocation4 + $0x200] sm:$0xff]
    %v124 = vld [vmem:[#allocation4 + $0x208] sm:$0xff]
    %v125 = vld [vmem:[#allocation4 + $0x210] sm:$0xff]
    %v126 = vld [vmem:[#allocation4 + $0x218] sm:$0xff]
    %v127 = vld [vmem:[#allocation4 + $0x220] sm:$0xff]
    %v128 = vld [vmem:[#allocation4 + $0x228] sm:$0xff]
    %v129 = vld [vmem:[#allocation4 + $0x230] sm:$0xff]
    %v130 = vld [vmem:[#allocation4 + $0x238] sm:$0xff]
    %v131 = vld [vmem:[#allocation4 + $0x240] sm:$0xff]
    %v132 = vld [vmem:[#allocation4 + $0x248] sm:$0xff]
    %v133 = vld [vmem:[#allocation4 + $0x250] sm:$0xff]
    %v134 = vld [vmem:[#allocation4 + $0x258] sm:$0xff]
    %v135 = vld [vmem:[#allocation4 + $0x260] sm:$0xff]
    %v136 = vld [vmem:[#allocation4 + $0x268] sm:$0xff]
    %v137 = vld [vmem:[#allocation4 + $0x270] sm:$0xff]
    %v138 = vld [vmem:[#allocation4 + $0x278] sm:$0xff]
    %v139 = vld [vmem:[#allocation4 + $0x280] sm:$0xff]
    %v140 = vld [vmem:[#allocation4 + $0x288] sm:$0xff]
    %v141 = vld [vmem:[#allocation4 + $0x290] sm:$0xff]
    %v142 = vld [vmem:[#allocation4 + $0x298] sm:$0xff]
    %v143 = vld [vmem:[#allocation4 + $0x2a0] sm:$0xff]
    %v144 = vld [vmem:[#allocation4 + $0x2a8] sm:$0xff]
    %v145 = vld [vmem:[#allocation4 + $0x2b0] sm:$0xff]
    %v146 = vld [vmem:[#allocation4 + $0x2b8] sm:$0xff]
    %v147 = vld [vmem:[#allocation4 + $0x2c0] sm:$0xff]
    %v148 = vld [vmem:[#allocation4 + $0x2c8] sm:$0xff]
    %v149 = vld [vmem:[#allocation4 + $0x2d0] sm:$0xff]
    %v150 = vld [vmem:[#allocation4 + $0x2d8] sm:$0xff]
    %v151 = vld [vmem:[#allocation4 + $0x2e0] sm:$0xff]
    %v152 = vld [vmem:[#allocation4 + $0x2e8] sm:$0xff]
    %v153 = vld [vmem:[#allocation4 + $0x2f0] sm:$0xff]
    %v154 = vld [vmem:[#allocation4 + $0x2f8] sm:$0xff]
    %v155 = vld [vmem:[%s4] sm:$0xf]
    %v157 = vlaneseq
    %v158 = vshrl.u32 %v157, 7
    %v159 = vsub.s32 0, %v158
    %v160 = vrot.slane %v155, %v159
    %v161 = vlaneseq
    %v162 = vshrl.u32 %v161, 7
    %v163 = vsub.s32 1, %v162
    %v164 = vrot.slane %v155, %v163
    %v165 = vlaneseq
    %v166 = vshrl.u32 %v165, 7
    %v167 = vsub.s32 2, %v166
    %v168 = vrot.slane %v155, %v167
    %v169 = vlaneseq
    %v170 = vshrl.u32 %v169, 7
    %v171 = vsub.s32 3, %v170
    %v172 = vrot.slane %v155, %v171
    %v177 = vsel %vm57, %v55, 0
    %179 = vmatprep.subr.mxu0 %v60
    %180 = vmatpush1.msra.mxu0 %v59
    %181 = vmatprep.subr.mxu0 %v64
    %182 = vmatpush1.msra.mxu0 %v63
    %183 = vmatprep.subr.mxu0 %v68
    %184 = vmatpush1.msra.mxu0 %v67
    %185 = vmatprep.subr.mxu0 %v72
    %186 = vmatpush1.msra.mxu0 %v71
    %187 = vmatprep.subr.mxu0 %v76
    %188 = vmatpush1.msra.mxu0 %v75
    %189 = vmatprep.subr.mxu0 %v80
    %190 = vmatpush1.msra.mxu0 %v79
    %191 = vmatprep.subr.mxu0 %v84
    %192 = vmatpush1.msra.mxu0 %v83
    %193 = vmatprep.subr.mxu0 %v88
    %194 = vmatpush1.msra.mxu0 %v87
    %195 = vmatprep.subr.mxu0 %v92
    %196 = vmatpush1.msra.mxu0 %v91
    %197 = vmatprep.subr.mxu0 %v96
    %198 = vmatpush1.msra.mxu0 %v95
    %199 = vmatprep.subr.mxu0 %v100
    %200 = vmatpush1.msra.mxu0 %v99
    %201 = vmatprep.subr.mxu0 %v104
    %202 = vmatpush1.msra.mxu0 %v103
    %203 = vmatprep.subr.mxu0 %v108
    %204 = vmatpush1.msra.mxu0 %v107
    %205 = vmatprep.subr.mxu0 %v112
    %206 = vmatpush1.msra.mxu0 %v111
    %207 = vmatprep.subr.mxu0 %v116
    %208 = vmatpush1.msra.mxu0 %v115
    %209 = vmatprep.subr.mxu0 %v120
    %210 = vmatpush1.msra.mxu0 %v119
    %211 = vmatprep.subr.mxu0 %v124
    %212 = vmatpush1.msra.mxu0 %v123
    %213 = vmatprep.subr.mxu0 %v128
    %214 = vmatpush1.msra.mxu0 %v127
    %215 = vmatprep.subr.mxu0 %v132
    %216 = vmatpush1.msra.mxu0 %v131
    %217 = vmatprep.subr.mxu0 %v136
    %218 = vmatpush1.msra.mxu0 %v135
    %219 = vmatprep.subr.mxu0 %v140
    %220 = vmatpush1.msra.mxu0 %v139
    %221 = vmatprep.subr.mxu0 %v144
    %222 = vmatpush1.msra.mxu0 %v143
    %223 = vmatprep.subr.mxu0 %v148
    %224 = vmatpush1.msra.mxu0 %v147
    %225 = vmatprep.subr.mxu0 %v152
    %226 = vmatpush1.msra.mxu0 %v151
    %227 = vmatprep.subr.mxu0 0.0
    %228 = vmatpush1.msra.mxu0 0.0
    %229 = vmatprep.subr.mxu0 0.0
    %230 = vmatpush1.msra.mxu0 0.0
    %231 = vmatprep.subr.mxu0 0.0
    %232 = vmatpush1.msra.mxu0 0.0
    %233 = vmatprep.subr.mxu0 0.0
    %234 = vmatpush1.msra.mxu0 0.0
    %235 = vmatprep.subr.mxu0 0.0
    %236 = vmatpush1.msra.mxu0 0.0
    %237 = vmatprep.subr.mxu0 0.0
    %238 = vmatpush1.msra.mxu0 0.0
    %239 = vmatprep.subr.mxu0 0.0
    %240 = vmatpush1.msra.mxu0 0.0
    %241 = vmatprep.subr.mxu0 0.0
    %242 = vmatpush1.msra.mxu0 0.0
    %243 = vmatprep.mubr.f32.mxu0 %v177
    %244 = vmatmul.mubr.f32.gmra.mrb[0].mxu0 %v58
    %v245 = vpop.f32.mrb[0].mxu0
    %v246 = vadd.f32 %v160, %v245
    %v247 = vpop.f32.mrb[0].mxu0
    %v248 = vadd.f32 %v164, %v247
    %249 = vdwg.mxu0
    %250 = vmatprep.subr.mxu0 %v62
    %251 = vmatpush1.msra.mxu0 %v61
    %252 = vmatprep.subr.mxu0 %v66
    %253 = vmatpush1.msra.mxu0 %v65
    %254 = vmatprep.subr.mxu0 %v70
    %255 = vmatpush1.msra.mxu0 %v69
    %256 = vmatprep.subr.mxu0 %v74
    %257 = vmatpush1.msra.mxu0 %v73
    %258 = vmatprep.subr.mxu0 %v78
    %259 = vmatpush1.msra.mxu0 %v77
    %260 = vmatprep.subr.mxu0 %v82
    %261 = vmatpush1.msra.mxu0 %v81
    %262 = vmatprep.subr.mxu0 %v86
    %263 = vmatpush1.msra.mxu0 %v85
    %264 = vmatprep.subr.mxu0 %v90
    %265 = vmatpush1.msra.mxu0 %v89
    %266 = vmatprep.subr.mxu0 %v94
    %267 = vmatpush1.msra.mxu0 %v93
    %268 = vmatprep.subr.mxu0 %v98
    %269 = vmatpush1.msra.mxu0 %v97
    %270 = vmatprep.subr.mxu0 %v102
    %271 = vmatpush1.msra.mxu0 %v101
    %272 = vmatprep.subr.mxu0 %v106
    %273 = vmatpush1.msra.mxu0 %v105
    %274 = vmatprep.subr.mxu0 %v110
    %275 = vmatpush1.msra.mxu0 %v109
    %276 = vmatprep.subr.mxu0 %v114
    %277 = vmatpush1.msra.mxu0 %v113
    %278 = vmatprep.subr.mxu0 %v118
    %279 = vmatpush1.msra.mxu0 %v117
    %280 = vmatprep.subr.mxu0 %v122
    %281 = vmatpush1.msra.mxu0 %v121
    %282 = vmatprep.subr.mxu0 %v126
    %283 = vmatpush1.msra.mxu0 %v125
    %284 = vmatprep.subr.mxu0 %v130
    %285 = vmatpush1.msra.mxu0 %v129
    %286 = vmatprep.subr.mxu0 %v134
    %287 = vmatpush1.msra.mxu0 %v133
    %288 = vmatprep.subr.mxu0 %v138
    %289 = vmatpush1.msra.mxu0 %v137
    %290 = vmatprep.subr.mxu0 %v142
    %291 = vmatpush1.msra.mxu0 %v141
    %292 = vmatprep.subr.mxu0 %v146
    %293 = vmatpush1.msra.mxu0 %v145
    %294 = vmatprep.subr.mxu0 %v150
    %295 = vmatpush1.msra.mxu0 %v149
    %296 = vmatprep.subr.mxu0 %v154
    %297 = vmatpush1.msra.mxu0 %v153
    %298 = vmatprep.subr.mxu0 0.0
    %299 = vmatpush1.msra.mxu0 0.0
    %300 = vmatprep.subr.mxu0 0.0
    %301 = vmatpush1.msra.mxu0 0.0
    %302 = vmatprep.subr.mxu0 0.0
    %303 = vmatpush1.msra.mxu0 0.0
    %304 = vmatprep.subr.mxu0 0.0
    %305 = vmatpush1.msra.mxu0 0.0
    %306 = vmatprep.subr.mxu0 0.0
    %307 = vmatpush1.msra.mxu0 0.0
    %308 = vmatprep.subr.mxu0 0.0
    %309 = vmatpush1.msra.mxu0 0.0
    %310 = vmatprep.subr.mxu0 0.0
    %311 = vmatpush1.msra.mxu0 0.0
    %312 = vmatprep.subr.mxu0 0.0
    %313 = vmatpush1.msra.mxu0 0.0
    %314 = vmatprep.mubr.f32.mxu0 %v177
    %315 = vmatmul.mubr.f32.gmra.mrb[0].mxu0 %v58
    %v316 = vpop.f32.mrb[0].mxu0
    %v317 = vadd.f32 %v168, %v316
    %v318 = vpop.f32.mrb[0].mxu0
    %v319 = vadd.f32 %v172, %v318
    %320 = vdwg.mxu0
    %v321 = vxor.u32 %v246, 2147483648
    %v322 = vmul.f32 %v321, 1.442695
    %v323 = vpow.pop %v322
    %v324 = vadd.f32 %v323, 1.0
    %v325 = vrcp.pop %v324
    %v326 = vmul.f32 1.0, %v325
    %v327 = vxor.u32 %v248, 2147483648
    %v328 = vmul.f32 %v327, 1.442695
    %v329 = vpow.pop %v328
    %v330 = vadd.f32 %v329, 1.0
    %v331 = vrcp.pop %v330
    %v332 = vmul.f32 1.0, %v331
    %v333 = vmul.f32 %v326, %v319
    %v334 = vadd.f32 %v317, %v333
    %v335 = vtanh.pop %v334
    %v336 = vsub.f32 1.0, %v332
    %v337 = vmul.f32 %v336, %v335
    %v338 = vmul.f32 %v332, %v48
    %v339 = vadd.f32 %v337, %v338
    %340 = vst [vmem:[%s5] sm:$0x1] %v339
    // Predicated region
    $region22: #{bidirectional_encoder_forward.1} parent=1 // pred_check
      _
    $region23: #{bidirectional_encoder_forward.1} parent=1 // pred_check_branch
      %342 = sbr.rel (0) target = $region25
    $region24: #{bidirectional_encoder_forward.1} parent=1 // pred_region
      _
    $region25: #{bidirectional_encoder_forward.1} parent=1 // pred_fallthru
      _
    // Predicated region
    $region26: #{bidirectional_encoder_forward.1} parent=1 // pred_check
      _
    $region27: #{bidirectional_encoder_forward.1} parent=1 // pred_check_branch
      %344 = sbr.rel (0) target = $region29
    $region28: #{bidirectional_encoder_forward.1} parent=1 // pred_region
      _
    $region29: #{bidirectional_encoder_forward.1} parent=1 // pred_fallthru
      _
    %345 = vsyncpa [#allocation5], 1

</llo_original>
